<compile_context>
chip_gen: v5e
topology: v5e:2x2
jax: 0.10.0
libtpu: 0.0.40
codegen_flags: <defaults>
</compile_context>

<pallas_src>
import functools

import jax
import jax.numpy as jnp
import numpy as np
from jax.experimental import pallas as pl
from jax.experimental.pallas import tpu as pltpu


# ---------------------------------------------------------------------------
# Fused Pallas kernel
# ---------------------------------------------------------------------------
def textgnn_fused_kernel(a_ref, ap_ref, x_ref, pk_ref, loss_ref, preds_ref,
                         *, layout, num_layers):
    """Fused:  h = GCN stack(x) ; logits = (A[pred] aggregation) ; weighted CE.

    GCNConv layer:  h <- act( A @ (h @ W) + b ),  A = D^{-1/2}(A+I)D^{-1/2}.
    The dot order per layer is chosen from the weight shape (shorter serial
    MXU chain / fewer MACs); the last layer only produces the pred rows via
    the pre-gathered adjacency rows `ap` (gather commutes with the LHS rows
    of the aggregation matmul, so results are identical).
    """
    def rd(slot):
        off, r, c = slot                      # static -> zero-cost ref view
        return pk_ref[off:off + r, 0:c]

    a = a_ref[...]                            # (N, N) — loaded once
    h = x_ref[...]                            # (N, D0)

    # Hidden layers: full-node propagation + relu.
    for l in range(num_layers - 1):
        w = rd(layout[2 * l])                 # (d_in, d_out)
        b = rd(layout[2 * l + 1])             # (1, d_out)
        d_in, d_out = w.shape
        if d_in < d_out:                      # widening: (A @ h) @ W is cheaper
            h = jnp.dot(jnp.dot(a, h, preferred_element_type=jnp.float32), w,
                        preferred_element_type=jnp.float32) + b
        else:                                 # narrowing: A @ (h @ W)
            h = jnp.dot(a, jnp.dot(h, w, preferred_element_type=jnp.float32),
                        preferred_element_type=jnp.float32) + b
        h = jnp.maximum(h, 0.0)               # act='relu' on all but last layer

    # Last layer (act='identity'): only pred rows, aggregated with A[pred_inds].
    w = rd(layout[2 * (num_layers - 1)])
    b = rd(layout[2 * (num_layers - 1) + 1])
    ap = ap_ref[...]                          # (M, N)
    d_in, d_out = w.shape
    if d_in < d_out:
        logits = jnp.dot(jnp.dot(ap, h, preferred_element_type=jnp.float32), w,
                         preferred_element_type=jnp.float32) + b
    else:
        logits = jnp.dot(ap, jnp.dot(h, w, preferred_element_type=jnp.float32),
                         preferred_element_type=jnp.float32) + b
    preds_ref[...] = logits.astype(preds_ref.dtype)

    # Weighted softmax cross-entropy (PyTorch 'mean' reduction with weights).
    cw = rd(layout[2 * num_layers])           # (1, C)
    onehot = rd(layout[2 * num_layers + 1])   # (M, C), pre-one-hot labels
    mx = jnp.max(logits, axis=-1, keepdims=True)
    lse = mx + jnp.log(jnp.sum(jnp.exp(logits - mx), axis=-1, keepdims=True))
    true_logit = jnp.sum(logits * onehot, axis=-1, keepdims=True)
    per_example = lse - true_logit                                 # (M, 1)
    wts = jnp.sum(onehot * cw, axis=-1, keepdims=True)             # (M, 1)
    loss_ref[0, 0] = jnp.sum(per_example * wts) / jnp.sum(wts)


# ---------------------------------------------------------------------------
# Wrapper (single gridless pallas_call for the whole forward + loss)
# ---------------------------------------------------------------------------
def _pack_params(arrs):
    """Pack 2-D f32 arrays into one buffer; each starts on an 8-row boundary."""
    max_c = max(int(a.shape[1]) for a in arrs)
    slots, off = [], 0
    for a in arrs:
        r, c = int(a.shape[0]), int(a.shape[1])
        slots.append((off, r, c))
        off += -(-r // 8) * 8                 # round rows up to sublane tile
    buf = jnp.zeros((off, max_c), jnp.float32)
    for (o, r, c), a in zip(slots, arrs):
        buf = buf.at[o:o + r, :c].set(a.astype(jnp.float32))
    return buf, tuple(slots)


def text_gnn_forward(a_norm, x, params, pred_inds, labels, class_weights):
    n, d0 = x.shape
    num_layers = len(params)
    c = params[-1][0].shape[1]
    m = pred_inds.shape[0]

    # Fold the pred-row gather into the last layer's aggregation LHS and pass
    # labels pre-one-hot (both are tiny host-side glue ops).
    a_pred = a_norm[pred_inds]                                    # (M, N)
    onehot = jax.nn.one_hot(labels, c, dtype=jnp.float32)         # (M, C)

    arrs = []
    for (w, b) in params:
        arrs += [w, b.reshape(1, -1)]
    arrs += [class_weights.reshape(1, c).astype(jnp.float32), onehot]
    packed, layout = _pack_params(arrs)

    kern = functools.partial(textgnn_fused_kernel, layout=layout,
                             num_layers=num_layers)
    vmem = lambda: pl.BlockSpec(memory_space=pltpu.MemorySpace.VMEM)
    # TODO(synk): if this runs per training step, stack several graphs along a
    # leading 'parallel' grid axis to use v7x's second TensorCore and amortize
    # the per-call launch + DMA prologue.
    loss, y_preds = pl.pallas_call(
        kern,
        out_shape=(
            jax.ShapeDtypeStruct((1, 1), jnp.float32),   # scalar loss (SMEM)
            jax.ShapeDtypeStruct((m, c), jnp.float32),   # prediction logits
        ),
        in_specs=[vmem(), vmem(), vmem(), vmem()],
        out_specs=(
            pl.BlockSpec(memory_space=pltpu.MemorySpace.SMEM),
            vmem(),
        ),
    )(a_norm, a_pred, x, packed)
    return loss[0, 0], y_preds


# ---------------------------------------------------------------------------
# Deterministic setup + run
# ---------------------------------------------------------------------------
def xavier_uniform(key, fan_in, fan_out, gain):
    bound = gain * np.sqrt(6.0 / (fan_in + fan_out))
    return jax.random.uniform(key, (fan_in, fan_out), jnp.float32, -bound, bound)


def build_norm_adj(n, edge_index, edge_weight):
    """Dense D^{-1/2}(A + I)D^{-1/2} (GCN normalization with edge weights)."""
    # TODO(synk): sparse scatter-based GCN normalization is host-side JAX glue
    # (graph preprocessing), not part of the per-forward Pallas kernel.
    a = jnp.zeros((n, n), jnp.float32)
    a = a.at[edge_index[0], edge_index[1]].add(edge_weight)
    a = a.at[edge_index[1], edge_index[0]].add(edge_weight)  # symmetrize
    a = a + jnp.eye(n, dtype=jnp.float32)                    # self loops (w=1)
    deg = jnp.sum(a, axis=1)
    d_inv_sqrt = jnp.where(deg > 0, 1.0 / jnp.sqrt(deg), 0.0)
    return a * d_inv_sqrt[:, None] * d_inv_sqrt[None, :]


if __name__ == "__main__":
    key = jax.random.PRNGKey(0)

    # Small, module-consistent shapes.
    N = 64                      # graph nodes
    layer_dim_list = [16, 32, 8]
    num_layers = 2
    num_labels = 8              # == layer_dim_list[-1]  (softmax pred_type)
    M = 16                      # number of prediction nodes
    E = 128                     # number of (directed) edges

    keys = jax.random.split(key, 10)
    x = jax.random.normal(keys[0], (N, layer_dim_list[0]), jnp.float32)
    src = jax.random.randint(keys[1], (E,), 0, N)
    dst = jax.random.randint(keys[2], (E,), 0, N)
    edge_index = jnp.stack([src, dst])
    edge_attr = jax.random.uniform(keys[3], (E,), jnp.float32, 0.1, 1.0)
    a_norm = build_norm_adj(N, edge_index, edge_attr)

    # Layer parameters (xavier_uniform with relu gain, bias zeros).
    gain = float(np.sqrt(2.0))
    params = []
    for i in range(num_layers):
        wk = jax.random.fold_in(keys[4], i)
        w = xavier_uniform(wk, layer_dim_list[i], layer_dim_list[i + 1], gain)
        b = jnp.zeros((layer_dim_list[i + 1],), jnp.float32)
        params.append((w, b))

    pred_inds = jnp.arange(M, dtype=jnp.int32)
    labels = jax.random.randint(keys[5], (M,), 0, num_labels)
    class_weights = jnp.ones((num_labels,), jnp.float32)

    loss, y_preds = text_gnn_forward(a_norm, x, params, pred_inds, labels,
                                     class_weights)
    jax.block_until_ready((loss, y_preds))

    # Pure-JAX reference (same weighted-CE semantics as the kernel / PyTorch).
    h = x
    for i, (w, b) in enumerate(params):
        h = a_norm @ (h @ w) + b
        if i < num_layers - 1:
            h = jnp.maximum(h, 0.0)
    ref_preds = h[pred_inds]
    logp = jax.nn.log_softmax(ref_preds, axis=-1)
    per_ex = -logp[jnp.arange(M), labels]
    wts = class_weights[labels]
    ref_loss = jnp.sum(per_ex * wts) / jnp.sum(wts)
    assert np.allclose(np.asarray(y_preds), np.asarray(ref_preds), atol=5e-4)
    assert np.allclose(float(loss), float(ref_loss), atol=5e-4)

    print("KERNEL_OK")
</pallas_src>

<mosaic_0001>
module attributes {stable_mosaic.version = 11 : i64} {
  func.func @textgnn_fused_kernel(%arg0: memref<64x64xf32, #tpu.memory_space<vmem>>, %arg1: memref<16x64xf32, #tpu.memory_space<vmem>>, %arg2: memref<64x16xf32, #tpu.memory_space<vmem>>, %arg3: memref<88x32xf32, #tpu.memory_space<vmem>>, %arg4: memref<1x1xf32, #tpu.memory_space<smem>>, %arg5: memref<16x8xf32, #tpu.memory_space<vmem>>) attributes {dimension_semantics = [], scalar_prefetch = 0 : i64, scratch_operands = 0 : i64, tpu.core_type = #tpu.core_type<tc>} {
    %c0 = arith.constant 0 : index
    %c0_0 = arith.constant 0 : index
    %0 = vector.load %arg0[%c0, %c0_0] : memref<64x64xf32, #tpu.memory_space<vmem>>, vector<64x64xf32>
    %c0_1 = arith.constant 0 : index
    %c0_2 = arith.constant 0 : index
    %1 = vector.load %arg2[%c0_1, %c0_2] : memref<64x16xf32, #tpu.memory_space<vmem>>, vector<64x16xf32>
    %c0_3 = arith.constant 0 : index
    %c0_4 = arith.constant 0 : index
    %2 = vector.load %arg3[%c0_3, %c0_4] : memref<88x32xf32, #tpu.memory_space<vmem>>, vector<16x32xf32>
    %c16 = arith.constant 16 : index
    %c0_5 = arith.constant 0 : index
    %3 = vector.load %arg3[%c16, %c0_5] : memref<88x32xf32, #tpu.memory_space<vmem>>, vector<1x32xf32>
    %cst = arith.constant dense<0.000000e+00> : vector<64x16xf32>
    %4 = tpu.matmul %0, %1, %cst {dimension_numbers = #tpu.dot_dimension_numbers<[1], [0], [0], [1], [0, 0, 1, 1], [], []>} : vector<64x64xf32>, vector<64x16xf32>, vector<64x16xf32> -> vector<64x16xf32>
    %cst_6 = arith.constant dense<0.000000e+00> : vector<64x32xf32>
    %5 = tpu.matmul %4, %2, %cst_6 {dimension_numbers = #tpu.dot_dimension_numbers<[1], [0], [0], [1], [0, 0, 1, 1], [], []>} : vector<64x16xf32>, vector<16x32xf32>, vector<64x32xf32> -> vector<64x32xf32>
    %6 = vector.broadcast %3 : vector<1x32xf32> to vector<64x32xf32>
    %7 = arith.addf %5, %6 : vector<64x32xf32>
    %cst_7 = arith.constant 0.000000e+00 : f32
    %8 = vector.broadcast %cst_7 : f32 to vector<64x32xf32>
    %9 = arith.maximumf %7, %8 : vector<64x32xf32>
    %c24 = arith.constant 24 : index
    %c0_8 = arith.constant 0 : index
    %10 = vector.load %arg3[%c24, %c0_8] : memref<88x32xf32, #tpu.memory_space<vmem>>, vector<32x8xf32>
    %c56 = arith.constant 56 : index
    %c0_9 = arith.constant 0 : index
    %11 = vector.load %arg3[%c56, %c0_9] : memref<88x32xf32, #tpu.memory_space<vmem>>, vector<1x8xf32>
    %c0_10 = arith.constant 0 : index
    %c0_11 = arith.constant 0 : index
    %12 = vector.load %arg1[%c0_10, %c0_11] : memref<16x64xf32, #tpu.memory_space<vmem>>, vector<16x64xf32>
    %cst_12 = arith.constant dense<0.000000e+00> : vector<64x8xf32>
    %13 = tpu.matmul %9, %10, %cst_12 {dimension_numbers = #tpu.dot_dimension_numbers<[1], [0], [0], [1], [0, 0, 1, 1], [], []>} : vector<64x32xf32>, vector<32x8xf32>, vector<64x8xf32> -> vector<64x8xf32>
    %cst_13 = arith.constant dense<0.000000e+00> : vector<16x8xf32>
    %14 = tpu.matmul %12, %13, %cst_13 {dimension_numbers = #tpu.dot_dimension_numbers<[1], [0], [0], [1], [0, 0, 1, 1], [], []>} : vector<16x64xf32>, vector<64x8xf32>, vector<16x8xf32> -> vector<16x8xf32>
    %15 = vector.broadcast %11 : vector<1x8xf32> to vector<16x8xf32>
    %16 = arith.addf %14, %15 : vector<16x8xf32>
    %c0_14 = arith.constant 0 : index
    %c0_15 = arith.constant 0 : index
    %17 = vector.load %arg5[%c0_14, %c0_15] : memref<16x8xf32, #tpu.memory_space<vmem>>, vector<16x8xf32>
    tpu.vector_store %arg5[%c0_14, %c0_15], %16 {strides = array<i32>} : memref<16x8xf32, #tpu.memory_space<vmem>>, vector<16x8xf32>,
    %c64 = arith.constant 64 : index
    %c0_16 = arith.constant 0 : index
    %18 = vector.load %arg3[%c64, %c0_16] : memref<88x32xf32, #tpu.memory_space<vmem>>, vector<1x8xf32>
    %c72 = arith.constant 72 : index
    %c0_17 = arith.constant 0 : index
    %19 = vector.load %arg3[%c72, %c0_17] : memref<88x32xf32, #tpu.memory_space<vmem>>, vector<16x8xf32>
    %cst_18 = arith.constant dense<0xFF800000> : vector<16xf32>
    %20 = vector.multi_reduction <maximumf>, %16, %cst_18 [1] : vector<16x8xf32> to vector<16xf32>
    %21 = vector.shape_cast %20 : vector<16xf32> to vector<16x1xf32>
    %22 = vector.broadcast %21 : vector<16x1xf32> to vector<16x8xf32>
    %23 = arith.subf %16, %22 : vector<16x8xf32>
    %24 = math.exp %23 : vector<16x8xf32>
    %cst_19 = arith.constant dense<0.000000e+00> : vector<16xf32>
    %25 = vector.multi_reduction <add>, %24, %cst_19 [1] : vector<16x8xf32> to vector<16xf32>
    %26 = vector.shape_cast %25 : vector<16xf32> to vector<16x1xf32>
    %27 = math.log %26 : vector<16x1xf32>
    %28 = arith.addf %21, %27 : vector<16x1xf32>
    %29 = arith.mulf %16, %19 : vector<16x8xf32>
    %cst_20 = arith.constant dense<0.000000e+00> : vector<16xf32>
    %30 = vector.multi_reduction <add>, %29, %cst_20 [1] : vector<16x8xf32> to vector<16xf32>
    %31 = vector.shape_cast %30 : vector<16xf32> to vector<16x1xf32>
    %32 = arith.subf %28, %31 : vector<16x1xf32>
    %33 = vector.broadcast %18 : vector<1x8xf32> to vector<16x8xf32>
    %34 = arith.mulf %19, %33 : vector<16x8xf32>
    %cst_21 = arith.constant dense<0.000000e+00> : vector<16xf32>
    %35 = vector.multi_reduction <add>, %34, %cst_21 [1] : vector<16x8xf32> to vector<16xf32>
    %36 = vector.shape_cast %35 : vector<16xf32> to vector<16x1xf32>
    %37 = arith.mulf %32, %36 : vector<16x1xf32>
    %38 = vector.shape_cast %37 : vector<16x1xf32> to vector<1x16x1xf32>
    %cst_22 = arith.constant dense<0.000000e+00> : vector<1xf32>
    %39 = vector.multi_reduction <add>, %38, %cst_22 [1, 2] : vector<1x16x1xf32> to vector<1xf32>
    %40 = vector.shape_cast %39 : vector<1xf32> to vector<1x1x1xf32>
    %41 = vector.extract %40[0, 0, 0] : f32 from vector<1x1x1xf32>
    %42 = vector.shape_cast %36 : vector<16x1xf32> to vector<1x16x1xf32>
    %cst_23 = arith.constant dense<0.000000e+00> : vector<1xf32>
    %43 = vector.multi_reduction <add>, %42, %cst_23 [1, 2] : vector<1x16x1xf32> to vector<1xf32>
    %44 = vector.shape_cast %43 : vector<1xf32> to vector<1x1x1xf32>
    %45 = vector.extract %44[0, 0, 0] : f32 from vector<1x1x1xf32>
    %46 = arith.divf %41, %45 : f32
    %c0_24 = arith.constant 0 : index
    %c0_25 = arith.constant 0 : index
    %47 = memref.load %arg4[%c0_24, %c0_25] : memref<1x1xf32, #tpu.memory_space<smem>>
    memref.store %46, %arg4[%c0_24, %c0_25] : memref<1x1xf32, #tpu.memory_space<smem>>
    return
  }
}

</mosaic_0001>

<llo_original>
// kernel: tpu_custom_call.1
$region0: #{tpu_custom_call.1}
  #allocation0 [shape = 'u32[]', space=smem, size = 0x4, offset = 0x4, fixed_abs, tag = 'smem constant byte address 0x4 - core index']
  #allocation1 [shape = 'u32[72,128]{1,0:T(1,128)}', space=vmem, size = 0x9000, scoped, tag = 'internal scratch']
  %s0 = inlined_call_operand.vmem [shape: f32[64,64], index: 0, kind: input, shape index: {}]
  %s1 = inlined_call_operand.vmem [shape: f32[16,64], index: 1, kind: input, shape index: {}]
  %s2 = inlined_call_operand.vmem [shape: f32[64,16], index: 2, kind: input, shape index: {}]
  %s3 = inlined_call_operand.vmem [shape: f32[88,32], index: 3, kind: input, shape index: {}]
  %s4 = inlined_call_operand.hbm [shape: f32[1,1], index: 4, kind: output, shape index: {0}]
  %s5 = inlined_call_operand.vmem [shape: f32[16,8], index: 5, kind: output, shape index: {1}]
  %6 = xla_tuple %s4, %s5
  %s7 = sld [smem:[#allocation0]]
  $region34: #{tpu_custom_call.1} parent=0
    _
  %s9 = ssub.s32 1, %s7
  %s10 = scalar_select 0, %s9, %s7
  $region1: #{tpu_custom_call.1} parent=0
    #allocation2 [shape = 'u8[512]{0}', space=smem, size = 0x200, scoped, tag = 'output window, operand 0, single buffered']
    #allocation3 [shape = 's32[1]{0}', space=sflag, size = 0x4, scoped, tag = 'scoped memory for tpu_custom_call.1']
    %11 = vsyncpa [#allocation3], 0
    // Predicated region
    $region2: #{tpu_custom_call.1} parent=1 // pred_check
      _
    $region3: #{tpu_custom_call.1} parent=1 // pred_check_branch
      %13 = sbr.rel (0) target = $region5
    $region4: #{tpu_custom_call.1} parent=1 // pred_region
      _
    $region5: #{tpu_custom_call.1} parent=1 // pred_fallthru
      _
    // Predicated region
    $region6: #{tpu_custom_call.1} parent=1 // pred_check
      _
    $region7: #{tpu_custom_call.1} parent=1 // pred_check_branch
      %15 = sbr.rel (0) target = $region9
    $region8: #{tpu_custom_call.1} parent=1 // pred_region
      _
    $region9: #{tpu_custom_call.1} parent=1 // pred_fallthru
      _
    // Predicated region
    $region10: #{tpu_custom_call.1} parent=1 // pred_check
      _
    $region11: #{tpu_custom_call.1} parent=1 // pred_check_branch
      %17 = sbr.rel (0) target = $region13
    $region12: #{tpu_custom_call.1} parent=1 // pred_region
      _
    $region13: #{tpu_custom_call.1} parent=1 // pred_fallthru
      _
    // Predicated region
    $region14: #{tpu_custom_call.1} parent=1 // pred_check
      _
    $region15: #{tpu_custom_call.1} parent=1 // pred_check_branch
      %19 = sbr.rel (0) target = $region17
    $region16: #{tpu_custom_call.1} parent=1 // pred_region
      _
    $region17: #{tpu_custom_call.1} parent=1 // pred_fallthru
      _
    %v20 = vld [vmem:[%s0] sm:$0xff]
    %v21 = vld [vmem:[%s0 + $0x8] sm:$0xff]
    %v22 = vld [vmem:[%s0 + $0x10] sm:$0xff]
    %v23 = vld [vmem:[%s0 + $0x18] sm:$0xff]
    %v24 = vld [vmem:[%s0 + $0x20] sm:$0xff]
    %v25 = vld [vmem:[%s0 + $0x28] sm:$0xff]
    %v26 = vld [vmem:[%s0 + $0x30] sm:$0xff]
    %v27 = vld [vmem:[%s0 + $0x38] sm:$0xff]
    %v28 = vld [vmem:[%s2] sm:$0xff]
    %v29 = vld [vmem:[%s2 + $0x8] sm:$0xff]
    %v30 = vld [vmem:[%s2 + $0x10] sm:$0xff]
    %v31 = vld [vmem:[%s2 + $0x18] sm:$0xff]
    %v32 = vld [vmem:[%s2 + $0x20] sm:$0xff]
    %v33 = vld [vmem:[%s2 + $0x28] sm:$0xff]
    %v34 = vld [vmem:[%s2 + $0x30] sm:$0xff]
    %v35 = vld [vmem:[%s2 + $0x38] sm:$0xff]
    %v36 = vld [vmem:[%s3] sm:$0xff]
    %v37 = vld [vmem:[%s3 + $0x8] sm:$0xff]
    %v38 = vld [vmem:[%s3 + $0x10] sm:$0x1]
    %vm39 = vcmask 523264
    %v41 = vsel %vm39, %v20, 0
    %v44 = vsel %vm39, %v21, 0
    %v47 = vsel %vm39, %v22, 0
    %v50 = vsel %vm39, %v23, 0
    %v53 = vsel %vm39, %v24, 0
    %v56 = vsel %vm39, %v25, 0
    %v59 = vsel %vm39, %v26, 0
    %v62 = vsel %vm39, %v27, 0
    %64 = vmatpush.msra.mxu0 0.0
    %65 = vmatpush.msra.mxu0 0.0
    %66 = vmatpush.msra.mxu0 0.0
    %67 = vmatpush.msra.mxu0 0.0
    %68 = vmatpush.msra.mxu0 0.0
    %69 = vmatpush.msra.mxu0 0.0
    %70 = vmatpush.msra.mxu0 0.0
    %71 = vmatpush.msra.mxu0 0.0
    %72 = vmatpush.msra.mxu0 %v35
    %73 = vmatpush.msra.mxu0 %v34
    %74 = vmatpush.msra.mxu0 %v33
    %75 = vmatpush.msra.mxu0 %v32
    %76 = vmatpush.msra.mxu0 %v31
    %77 = vmatpush.msra.mxu0 %v30
    %78 = vmatpush.msra.mxu0 %v29
    %79 = vmatpush.msra.mxu0 %v28
    %80 = vmatmul.f32.gmra.mxu0 %v41
    %v81 = vpop.f32.mrf.mxu0
    %v82 = vadd.f32 0.0, %v81
    %83 = vmatmul.f32.gmra.mxu0 %v44
    %v84 = vpop.f32.mrf.mxu0
    %v85 = vadd.f32 0.0, %v84
    %86 = vmatmul.f32.gmra.mxu0 %v47
    %v87 = vpop.f32.mrf.mxu0
    %v88 = vadd.f32 0.0, %v87
    %89 = vmatmul.f32.gmra.mxu0 %v50
    %v90 = vpop.f32.mrf.mxu0
    %v91 = vadd.f32 0.0, %v90
    %92 = vmatmul.f32.gmra.mxu0 %v53
    %v93 = vpop.f32.mrf.mxu0
    %v94 = vadd.f32 0.0, %v93
    %95 = vmatmul.f32.gmra.mxu0 %v56
    %v96 = vpop.f32.mrf.mxu0
    %v97 = vadd.f32 0.0, %v96
    %98 = vmatmul.f32.gmra.mxu0 %v59
    %v99 = vpop.f32.mrf.mxu0
    %v100 = vadd.f32 0.0, %v99
    %101 = vmatmul.f32.gmra.mxu0 %v62
    %v102 = vpop.f32.mrf.mxu0
    %v103 = vadd.f32 0.0, %v102
    %104 = vdwg.mxu0
    %v105 = vperm.slane %v38, 0
    %vm106 = vcmask 130048
    %v108 = vsel %vm106, %v82, 0
    %v111 = vsel %vm106, %v85, 0
    %v114 = vsel %vm106, %v88, 0
    %v117 = vsel %vm106, %v91, 0
    %v120 = vsel %vm106, %v94, 0
    %v123 = vsel %vm106, %v97, 0
    %v126 = vsel %vm106, %v100, 0
    %v129 = vsel %vm106, %v103, 0
    %131 = vmatpush.msra.mxu0 0.0
    %132 = vmatpush.msra.mxu0 0.0
    %133 = vmatpush.msra.mxu0 0.0
    %134 = vmatpush.msra.mxu0 0.0
    %135 = vmatpush.msra.mxu0 0.0
    %136 = vmatpush.msra.mxu0 0.0
    %137 = vmatpush.msra.mxu0 0.0
    %138 = vmatpush.msra.mxu0 0.0
    %139 = vmatpush.msra.mxu0 0.0
    %140 = vmatpush.msra.mxu0 0.0
    %141 = vmatpush.msra.mxu0 0.0
    %142 = vmatpush.msra.mxu0 0.0
    %143 = vmatpush.msra.mxu0 0.0
    %144 = vmatpush.msra.mxu0 0.0
    %145 = vmatpush.msra.mxu0 %v37
    %146 = vmatpush.msra.mxu0 %v36
    %147 = vmatmul.f32.gmra.mxu0 %v108
    %v148 = vpop.f32.mrf.mxu0
    %v149 = vadd.f32 %v105, %v148
    %150 = vmatmul.f32.gmra.mxu0 %v111
    %v151 = vpop.f32.mrf.mxu0
    %v152 = vadd.f32 %v105, %v151
    %153 = vmatmul.f32.gmra.mxu0 %v114
    %v154 = vpop.f32.mrf.mxu0
    %v155 = vadd.f32 %v105, %v154
    %156 = vmatmul.f32.gmra.mxu0 %v117
    %v157 = vpop.f32.mrf.mxu0
    %v158 = vadd.f32 %v105, %v157
    %159 = vmatmul.f32.gmra.mxu0 %v120
    %v160 = vpop.f32.mrf.mxu0
    %v161 = vadd.f32 %v105, %v160
    %162 = vmatmul.f32.gmra.mxu0 %v123
    %v163 = vpop.f32.mrf.mxu0
    %v164 = vadd.f32 %v105, %v163
    %165 = vmatmul.f32.gmra.mxu0 %v126
    %v166 = vpop.f32.mrf.mxu0
    %v167 = vadd.f32 %v105, %v166
    %168 = vmatmul.f32.gmra.mxu0 %v129
    %v169 = vpop.f32.mrf.mxu0
    %v170 = vadd.f32 %v105, %v169
    %171 = vdwg.mxu0
    %v172 = vmax.f32 %v149, 0.0
    %v173 = vmax.f32 %v152, 0.0
    %v174 = vmax.f32 %v155, 0.0
    %v175 = vmax.f32 %v158, 0.0
    %v176 = vmax.f32 %v161, 0.0
    %v177 = vmax.f32 %v164, 0.0
    %v178 = vmax.f32 %v167, 0.0
    %v179 = vmax.f32 %v170, 0.0
    %v180 = vld [vmem:[%s3 + $0x18] sm:$0xff]
    %v181 = vld [vmem:[%s3 + $0x20] sm:$0xff]
    %v182 = vld [vmem:[%s3 + $0x28] sm:$0xff]
    %v183 = vld [vmem:[%s3 + $0x30] sm:$0xff]
    %v184 = vld [vmem:[%s3 + $0x38] sm:$0x1]
    %v185 = vld [vmem:[%s1] sm:$0xff]
    %v186 = vld [vmem:[%s1 + $0x8] sm:$0xff]
    %vm187 = vcmask 261120
    %v189 = vsel %vm187, %v172, 0
    %v192 = vsel %vm187, %v173, 0
    %v195 = vsel %vm187, %v174, 0
    %v198 = vsel %vm187, %v175, 0
    %v201 = vsel %vm187, %v176, 0
    %v204 = vsel %vm187, %v177, 0
    %v207 = vsel %vm187, %v178, 0
    %v210 = vsel %vm187, %v179, 0
    %212 = vmatpush.msra.mxu0 0.0
    %213 = vmatpush.msra.mxu0 0.0
    %214 = vmatpush.msra.mxu0 0.0
    %215 = vmatpush.msra.mxu0 0.0
    %216 = vmatpush.msra.mxu0 0.0
    %217 = vmatpush.msra.mxu0 0.0
    %218 = vmatpush.msra.mxu0 0.0
    %219 = vmatpush.msra.mxu0 0.0
    %220 = vmatpush.msra.mxu0 0.0
    %221 = vmatpush.msra.mxu0 0.0
    %222 = vmatpush.msra.mxu0 0.0
    %223 = vmatpush.msra.mxu0 0.0
    %224 = vmatpush.msra.mxu0 %v183
    %225 = vmatpush.msra.mxu0 %v182
    %226 = vmatpush.msra.mxu0 %v181
    %227 = vmatpush.msra.mxu0 %v180
    %228 = vmatmul.f32.gmra.mxu0 %v189
    %v229 = vpop.f32.mrf.mxu0
    %v230 = vadd.f32 0.0, %v229
    %231 = vmatmul.f32.gmra.mxu0 %v192
    %v232 = vpop.f32.mrf.mxu0
    %v233 = vadd.f32 0.0, %v232
    %234 = vmatmul.f32.gmra.mxu0 %v195
    %v235 = vpop.f32.mrf.mxu0
    %v236 = vadd.f32 0.0, %v235
    %237 = vmatmul.f32.gmra.mxu0 %v198
    %v238 = vpop.f32.mrf.mxu0
    %v239 = vadd.f32 0.0, %v238
    %240 = vmatmul.f32.gmra.mxu0 %v201
    %v241 = vpop.f32.mrf.mxu0
    %v242 = vadd.f32 0.0, %v241
    %243 = vmatmul.f32.gmra.mxu0 %v204
    %v244 = vpop.f32.mrf.mxu0
    %v245 = vadd.f32 0.0, %v244
    %246 = vmatmul.f32.gmra.mxu0 %v207
    %v247 = vpop.f32.mrf.mxu0
    %v248 = vadd.f32 0.0, %v247
    %249 = vmatmul.f32.gmra.mxu0 %v210
    %v250 = vpop.f32.mrf.mxu0
    %v251 = vadd.f32 0.0, %v250
    %252 = vdwg.mxu0
    %v253 = vperm.slane %v184, 0
    %v255 = vsel %vm39, %v185, 0
    %v258 = vsel %vm39, %v186, 0
    %260 = vmatpush.msra.mxu0 0.0
    %261 = vmatpush.msra.mxu0 0.0
    %262 = vmatpush.msra.mxu0 0.0
    %263 = vmatpush.msra.mxu0 0.0
    %264 = vmatpush.msra.mxu0 0.0
    %265 = vmatpush.msra.mxu0 0.0
    %266 = vmatpush.msra.mxu0 0.0
    %267 = vmatpush.msra.mxu0 0.0
    %268 = vmatpush.msra.mxu0 %v251
    %269 = vmatpush.msra.mxu0 %v248
    %270 = vmatpush.msra.mxu0 %v245
    %271 = vmatpush.msra.mxu0 %v242
    %272 = vmatpush.msra.mxu0 %v239
    %273 = vmatpush.msra.mxu0 %v236
    %274 = vmatpush.msra.mxu0 %v233
    %275 = vmatpush.msra.mxu0 %v230
    %276 = vmatmul.f32.gmra.mxu0 %v255
    %v277 = vpop.f32.mrf.mxu0
    %v278 = vadd.f32 %v253, %v277
    %279 = vmatmul.f32.gmra.mxu0 %v258
    %v280 = vpop.f32.mrf.mxu0
    %v281 = vadd.f32 %v253, %v280
    %282 = vdwg.mxu0
    %vm283 = vcmask 64512
    %284 = vst.msk [vmem:[%s5] sm:$0xff] %vm283, %v278
    %285 = vst.msk [vmem:[%s5 + $0x8] sm:$0xff] %vm283, %v281
    %v286 = vld [vmem:[%s3 + $0x40] sm:$0x1]
    %v287 = vld [vmem:[%s3 + $0x48] sm:$0xff]
    %v288 = vld [vmem:[%s3 + $0x50] sm:$0xff]
    %v289 = vsel %vm283, %v278, -inf
    %290 = vmax.xlane.f32.xlu0 %v289
    %v291 = vpop.xlane.xlu0 %290
    %v292 = vsel %vm283, %v281, -inf
    %293 = vmax.xlane.f32.xlu0 %v292
    %v294 = vpop.xlane.xlu0 %293
    %v295 = vsub.f32 %v278, %v291
    %v296 = vsub.f32 %v281, %v294
    %v297 = vmul.f32 %v295, 1.442695
    %v298 = vpow.pop %v297
    %v299 = vmul.f32 %v296, 1.442695
    %v300 = vpow.pop %v299
    %v301 = vsel %vm283, %v298, 0.0
    %302 = vadd.xlane.f32.xlu0 %v301
    %v303 = vpop.xlane.xlu0 %302
    %v304 = vsel %vm283, %v300, 0.0
    %305 = vadd.xlane.f32.xlu0 %v304
    %v306 = vpop.xlane.xlu0 %305
    %v307 = vlog2.pop %v303
    %v308 = vmul.f32 %v307, 0.6931472
    %v309 = vlog2.pop %v306
    %v310 = vmul.f32 %v309, 0.6931472
    %v311 = vadd.f32 %v291, %v308
    %v312 = vadd.f32 %v294, %v310
    %v313 = vmul.f32 %v278, %v287
    %v314 = vmul.f32 %v281, %v288
    %v315 = vsel %vm283, %v313, 0.0
    %316 = vadd.xlane.f32.xlu0 %v315
    %v317 = vpop.xlane.xlu0 %316
    %v318 = vsel %vm283, %v314, 0.0
    %319 = vadd.xlane.f32.xlu0 %v318
    %v320 = vpop.xlane.xlu0 %319
    %v321 = vsub.f32 %v311, %v317
    %v322 = vsub.f32 %v312, %v320
    %v323 = vperm.slane %v286, 0
    %v324 = vmul.f32 %v287, %v323
    %v325 = vmul.f32 %v288, %v323
    %v326 = vsel %vm283, %v324, 0.0
    %327 = vadd.xlane.f32.xlu0 %v326
    %v328 = vpop.xlane.xlu0 %327
    %v329 = vsel %vm283, %v325, 0.0
    %330 = vadd.xlane.f32.xlu0 %v329
    %v331 = vpop.xlane.xlu0 %330
    %v332 = vmul.f32 %v321, %v328
    %v333 = vmul.f32 %v322, %v331
    %vm334 = vcmask 7168
    %v335 = vsel %vm334, %v332, 0.0
    %v336 = vsel %vm334, %v333, 0.0
    %v337 = vadd.f32 %v335, %v336
    %338 = vadd.xlane.f32.xlu0 %v337
    %v339 = vpop.xlane.xlu0 %338
    %v340 = vrot.slane %v339, 4
    %v341 = vadd.f32 %v339, %v340
    %v342 = vrot.slane %v341, 2
    %v343 = vadd.f32 %v341, %v342
    %v344 = vrot.slane %v343, 1
    %v345 = vadd.f32 %v343, %v344
    %s346 = vtos %v345
    %v347 = vsel %vm334, %v328, 0.0
    %v348 = vsel %vm334, %v331, 0.0
    %v349 = vadd.f32 %v347, %v348
    %350 = vadd.xlane.f32.xlu0 %v349
    %v351 = vpop.xlane.xlu0 %350
    %v352 = vrot.slane %v351, 4
    %v353 = vadd.f32 %v351, %v352
    %v354 = vrot.slane %v353, 2
    %v355 = vadd.f32 %v353, %v354
    %v356 = vrot.slane %v355, 1
    %v357 = vadd.f32 %v355, %v356
    %s358 = vtos %v357
    %v359 = vstv %s358
    %v360 = vrcp.pop %v359
    %v361 = vmul.f32 %v359, %v360
    %v362 = vsub.f32 1.0, %v361
    %v363 = vmul.f32 %v360, %v362
    %v364 = vadd.f32 %v360, %v363
    %vm365 = vweird.f32 %v359
    %vm366 = vweird.f32 %v360
    %vm367 = vmor %vm365, %vm366
    %v368 = vsel %vm367, %v360, %v364
    %v369 = vand.u32 2147483647, %v359
    %vm370 = vcmp.eq.f32.partialorder %v369, 8.507059e+37
    %v371 = vand.u32 %v359, 2147483648
    %v372 = vor.u32 1.1754944e-38, %v371
    %v373 = vsel %vm370, %v372, %v368
    %s374 = vtos %v373
    %s375 = smul.f32 %s346, %s374
    %s376 = scalar_lea.smem [#allocation2], 0
    %377 = sst [smem:[%s376]] %s375
    // Predicated region
    $region18: #{tpu_custom_call.1} parent=1 // pred_check
      _
    $region19: #{tpu_custom_call.1} parent=1 // pred_check_branch
      %379 = sbr.rel (0) target = $region21
    $region20: #{tpu_custom_call.1} parent=1 // pred_region
      %381 = vsyncadd [#allocation3], 0
      %s383 = sshll.u32 %s4, 4
      %s384 = int_to_ptr.hbm [resolvable:$true] %s383
      %386 = dma.smem_to_hbm [#allocation2], 16, %s384, [#allocation3]
    $region21: #{tpu_custom_call.1} parent=1 // pred_fallthru
      _
    // Predicated region
    $region22: #{tpu_custom_call.1} parent=1 // pred_check
      _
    $region23: #{tpu_custom_call.1} parent=1 // pred_check_branch
      %388 = sbr.rel (0) target = $region25
    $region24: #{tpu_custom_call.1} parent=1 // pred_region
      _
    $region25: #{tpu_custom_call.1} parent=1 // pred_fallthru
      _
    // Predicated region
    $region26: #{tpu_custom_call.1} parent=1 // pred_check
      _
    $region27: #{tpu_custom_call.1} parent=1 // pred_check_branch
      %390 = sbr.rel (0) target = $region29
    $region28: #{tpu_custom_call.1} parent=1 // pred_region
      %392 = dma.done [#allocation3], 16
    $region29: #{tpu_custom_call.1} parent=1 // pred_fallthru
      _
    // Predicated region
    $region30: #{tpu_custom_call.1} parent=1 // pred_check
      _
    $region31: #{tpu_custom_call.1} parent=1 // pred_check_branch
      %394 = sbr.rel (0) target = $region33
    $region32: #{tpu_custom_call.1} parent=1 // pred_region
      _
    $region33: #{tpu_custom_call.1} parent=1 // pred_fallthru
      _
    %395 = sfence
    %396 = vsyncpa [#allocation3], 1

</llo_original>
